<compile_context>
chip_gen: v7x
topology: tpu7x:2x2x1
jax: 0.10.0
libtpu: 0.0.40
codegen_flags: <defaults>
</compile_context>

<pallas_src>
import jax
import jax.numpy as jnp
import numpy as np
from jax.experimental import pallas as pl
from jax.experimental.pallas import tpu as pltpu


# Lanes per tile when tiling over N (multiple of 128; 5*TILE_N*4B ~= 1.25 MiB
# per buffer -> a few MiB with double-buffered in+out, comfortably under the
# scoped-VMEM default on v5e / v6e / v7x).
TILE_N = 16384


def _ihds_kernel(p_ref, y_ref, o_ref):
    # p_ref (SMEM, f32[6]): [b, g, nu, lam, g+nu, g+lam]
    b = p_ref[0]
    g = p_ref[1]
    nu = p_ref[2]
    lam = p_ref[3]
    g_nu = p_ref[4]
    g_lam = p_ref[5]

    # y tile (5, TILE_N): rows = [I, H, D, S, R]
    I = y_ref[0:1, :]          # (1, tile_n)
    H = y_ref[1:2, :]
    S = y_ref[3:4, :]

    bIS = b * I * S
    dI = bIS - g_nu * I
    dH = nu * I - g_lam * H
    dD = lam * H
    dS = -bIS
    dR = g * I

    # Single dense (5, tile_n) store instead of five single-sublane stores.
    o_ref[...] = jnp.concatenate([dI, dH, dD, dS, dR], axis=0)


def ihds_rhs_5xN(t, yT, parms, start_confin, end_confin, tile_n=TILE_N):
    """Derivative in (5, N) layout (preferred: avoids any transpose pass).

    yT: (5, N) float32, rows [I, H, D, S, R]
    returns: (5, N) float32, rows [dI, dH, dD, dS, dR]
    """
    yT = jnp.asarray(yT, jnp.float32)
    N = yT.shape[1]

    # Scalar-only transmission-rate math, hoisted out of the vector path.
    b1, b2, b3, g, nu, lam = [jnp.float32(p) for p in parms]
    t = jnp.float32(t)
    start = jnp.float32(start_confin)
    end = jnp.float32(end_confin)
    sig = lambda x: 1.0 / (1.0 + jnp.exp(-x))
    b = b1 + b2 * sig(t - start) + b3 * sig(t - end)

    params = jnp.stack([b, g, nu, lam, g + nu, g + lam]).astype(jnp.float32)

    # Tile over N (lane-dense blocks); single full block when N is small.
    if N <= tile_n:
        tile_n = N
    grid_n = pl.cdiv(N, tile_n)

    cost = pl.CostEstimate(
        flops=11 * N,
        transcendentals=0,
        bytes_accessed=2 * 5 * N * 4,
    )

    out = pl.pallas_call(
        _ihds_kernel,
        out_shape=jax.ShapeDtypeStruct((5, N), jnp.float32),
        grid=(grid_n,),
        in_specs=[
            pl.BlockSpec(memory_space=pltpu.MemorySpace.SMEM),      # scalars
            pl.BlockSpec((5, tile_n), lambda i: (0, i)),            # y tile
        ],
        out_specs=pl.BlockSpec((5, tile_n), lambda i: (0, i)),
        compiler_params=pltpu.CompilerParams(
            dimension_semantics=("parallel",),
        ),
        cost_estimate=cost,
    )(params, yT)

    return out


def ihds_forward(t, y, parms, start_confin, end_confin, tile_n=TILE_N):
    """Pallas equivalent of IHDS_model.forward.

    t: scalar time
    y: (N, 5) float32, columns [I, H, D, S, R]  (PyTorch layout)
    parms: length-6 sequence [b1, b2, b3, g, nu, l]
    returns: (5*N,) float32 = concat(dI, dH, dD, dS, dR)
    """
    # TODO(synk): keep the solver state in (5, N) layout end-to-end and call
    # ihds_rhs_5xN directly; this transpose costs an extra HBM pass per RHS.
    yT = jnp.asarray(y, jnp.float32).T          # (5, N)
    d = ihds_rhs_5xN(t, yT, parms, start_confin, end_confin, tile_n=tile_n)
    return d.reshape(-1)


def _reference_forward(t, y, parms, start_confin, end_confin):
    """Pure-JAX reference mirroring the PyTorch module."""
    b1, b2, b3, g, nu, lam = [jnp.float32(p) for p in parms]
    start = jnp.float32(start_confin)
    end = jnp.float32(end_confin)
    t = jnp.float32(t)
    I, H, D, S, R = y[:, 0], y[:, 1], y[:, 2], y[:, 3], y[:, 4]
    sig = lambda x: 1.0 / (1.0 + jnp.exp(-x))
    b = b1 + b2 * sig(t - start) + b3 * sig(t - end)
    dS = -b * I * S
    dI = b * I * S - g * I - nu * I
    dR = g * I
    dH = nu * I - g * H - lam * H
    dD = lam * H
    return jnp.concatenate((dI, dH, dD, dS, dR), axis=0)


if __name__ == "__main__":
    key = jax.random.PRNGKey(0)

    # Deterministic "learned" parameters [b1, b2, b3, g, nu, l].
    parms = [0.30, -0.10, 0.05, 0.10, 0.02, 0.01]
    start_confin = 20.0
    end_confin = 60.0
    t = 30.0

    # Case 1: small N, single full-array block.
    N1 = 8
    k1, k2 = jax.random.split(key)
    y1 = jax.random.uniform(k1, (N1, 5), dtype=jnp.float32, minval=0.0, maxval=1.0)
    out1 = jax.block_until_ready(ihds_forward(t, y1, parms, start_confin, end_confin))
    ref1 = _reference_forward(t, y1, parms, start_confin, end_confin)
    np.testing.assert_allclose(np.asarray(out1), np.asarray(ref1),
                               rtol=1e-5, atol=1e-6)

    # Case 2: force the tiled/grid path, including a partial last tile
    # (N = 300 with tile_n = 128 -> grid of 3, masked writeback on tile 2).
    N2 = 300
    y2 = jax.random.uniform(k2, (N2, 5), dtype=jnp.float32, minval=0.0, maxval=1.0)
    out2 = jax.block_until_ready(
        ihds_forward(t, y2, parms, start_confin, end_confin, tile_n=128))
    ref2 = _reference_forward(t, y2, parms, start_confin, end_confin)
    np.testing.assert_allclose(np.asarray(out2), np.asarray(ref2),
                               rtol=1e-5, atol=1e-6)

    print("KERNEL_OK")
</pallas_src>

<mosaic_0001>
module attributes {stable_mosaic.version = 11 : i64} {
  func.func @_ihds_kernel(%arg0: i32, %arg1: memref<6xf32, #tpu.memory_space<smem>>, %arg2: memref<5x8xf32, #tpu.memory_space<vmem>>, %arg3: memref<5x8xf32, #tpu.memory_space<vmem>>) attributes {dimension_semantics = [#tpu.dimension_semantics<parallel>], iteration_bounds = array<i64: 1>, scalar_prefetch = 0 : i64, scratch_operands = 0 : i64, tpu.core_type = #tpu.core_type<tc>, window_params = [{transform_indices = @transform_0, window_bounds = array<i64: 6>}, {transform_indices = @transform_1, window_bounds = array<i64: 5, 8>}, {transform_indices = @transform_2, window_bounds = array<i64: 5, 8>}]} {
    %c0 = arith.constant 0 : index
    %0 = memref.load %arg1[%c0] : memref<6xf32, #tpu.memory_space<smem>>
    %c1 = arith.constant 1 : index
    %1 = memref.load %arg1[%c1] : memref<6xf32, #tpu.memory_space<smem>>
    %c2 = arith.constant 2 : index
    %2 = memref.load %arg1[%c2] : memref<6xf32, #tpu.memory_space<smem>>
    %c3 = arith.constant 3 : index
    %3 = memref.load %arg1[%c3] : memref<6xf32, #tpu.memory_space<smem>>
    %c4 = arith.constant 4 : index
    %4 = memref.load %arg1[%c4] : memref<6xf32, #tpu.memory_space<smem>>
    %c5 = arith.constant 5 : index
    %5 = memref.load %arg1[%c5] : memref<6xf32, #tpu.memory_space<smem>>
    %c0_0 = arith.constant 0 : index
    %c0_1 = arith.constant 0 : index
    %6 = vector.load %arg2[%c0_0, %c0_1] : memref<5x8xf32, #tpu.memory_space<vmem>>, vector<1x8xf32>
    %c1_2 = arith.constant 1 : index
    %c0_3 = arith.constant 0 : index
    %7 = vector.load %arg2[%c1_2, %c0_3] : memref<5x8xf32, #tpu.memory_space<vmem>>, vector<1x8xf32>
    %c3_4 = arith.constant 3 : index
    %c0_5 = arith.constant 0 : index
    %8 = vector.load %arg2[%c3_4, %c0_5] : memref<5x8xf32, #tpu.memory_space<vmem>>, vector<1x8xf32>
    %9 = vector.broadcast %0 : f32 to vector<1x8xf32>
    %10 = arith.mulf %9, %6 : vector<1x8xf32>
    %11 = arith.mulf %10, %8 : vector<1x8xf32>
    %12 = vector.broadcast %4 : f32 to vector<1x8xf32>
    %13 = arith.mulf %12, %6 : vector<1x8xf32>
    %14 = arith.subf %11, %13 : vector<1x8xf32>
    %15 = vector.broadcast %2 : f32 to vector<1x8xf32>
    %16 = arith.mulf %15, %6 : vector<1x8xf32>
    %17 = vector.broadcast %5 : f32 to vector<1x8xf32>
    %18 = arith.mulf %17, %7 : vector<1x8xf32>
    %19 = arith.subf %16, %18 : vector<1x8xf32>
    %20 = vector.broadcast %3 : f32 to vector<1x8xf32>
    %21 = arith.mulf %20, %7 : vector<1x8xf32>
    %cst = arith.constant 0.000000e+00 : f32
    %22 = vector.broadcast %cst : f32 to vector<1x8xf32>
    %23 = arith.subf %22, %11 : vector<1x8xf32>
    %24 = vector.broadcast %1 : f32 to vector<1x8xf32>
    %25 = arith.mulf %24, %6 : vector<1x8xf32>
    %26 = tpu.concatenate %14, %19, %21, %23, %25 in 0 : vector<1x8xf32>, vector<1x8xf32>, vector<1x8xf32>, vector<1x8xf32>, vector<1x8xf32> -> vector<5x8xf32>
    %c0_6 = arith.constant 0 : index
    %c0_7 = arith.constant 0 : index
    %27 = vector.load %arg3[%c0_6, %c0_7] : memref<5x8xf32, #tpu.memory_space<vmem>>, vector<5x8xf32>
    tpu.vector_store %arg3[%c0_6, %c0_7], %26 {strides = array<i32>} : memref<5x8xf32, #tpu.memory_space<vmem>>, vector<5x8xf32>,
    return
  }
  func.func @transform_0(%arg0: i32) -> i32 {
    %c0_i32 = arith.constant 0 : i32
    %c0_i32_0 = arith.constant 0 : i32
    return %c0_i32 : i32
  }
  func.func @transform_1(%arg0: i32) -> (i32, i32) {
    %c0_i32 = arith.constant 0 : i32
    %c0_i32_0 = arith.constant 0 : i32
    return %c0_i32, %arg0 : i32, i32
  }
  func.func @transform_2(%arg0: i32) -> (i32, i32) {
    %c0_i32 = arith.constant 0 : i32
    %c0_i32_0 = arith.constant 0 : i32
    return %c0_i32, %arg0 : i32, i32
  }
}

</mosaic_0001>

<llo_original>
// kernel: tpu_custom_call.1
$region0: #{tpu_custom_call.1}
  #allocation0 [shape = 'u32[]', space=smem, size = 0x4, offset = 0x4, fixed_abs, tag = 'smem constant byte address 0x4 - core index']
  #allocation1 [shape = 'u32[144,128]{1,0:T(1,128)}', space=vmem, size = 0x12000, scoped, tag = 'internal scratch']
  %s0 = inlined_call_operand.hbm [shape: f32[6], index: 0, kind: input, shape index: {}]
  %s1 = inlined_call_operand.hbm [shape: f32[5,8], index: 1, kind: input, shape index: {}]
  %s2 = inlined_call_operand.hbm [shape: f32[5,8], index: 2, kind: output, shape index: {}]
  %s3 = sld [smem:[#allocation0]]
  $region26: #{tpu_custom_call.1} parent=0
    _
  %s5 = ssub.s32 1, %s3
  %s6 = scalar_select 0, %s5, %s3
  $region1: #{tpu_custom_call.1} parent=0
    #allocation2 [shape = 'u8[512]{0}', space=smem, size = 0x200, scoped, tag = 'input window, operand 0, single buffered']
    #allocation3 [shape = 's32[1]{0}', space=sflag, size = 0x4, scoped, tag = 'scoped memory for tpu_custom_call.1']
    #allocation4 [shape = 's32[1]{0}', space=sflag, size = 0x4, scoped, tag = 'scoped memory for tpu_custom_call.1']
    #allocation5 [shape = 's32[1]{0}', space=sflag, size = 0x4, scoped, tag = 'scoped memory for tpu_custom_call.1']
    #allocation6 [shape = 'u8[4096]{0}', space=vmem, size = 0x1000, scoped, tag = 'input window, operand 1, single buffered']
    #allocation7 [shape = 'u8[4096]{0}', space=vmem, size = 0x1000, scoped, tag = 'output window, operand 0, single buffered']
    %7 = vsyncpa [#allocation5], 0
    %8 = vsyncpa [#allocation3], 0
    %9 = vsyncpa [#allocation4], 0
    // Predicated region
    $region2: #{tpu_custom_call.1} parent=1 // pred_check
      _
    $region3: #{tpu_custom_call.1} parent=1 // pred_check_branch
      %11 = sbr.rel (0) target = $region5
    $region4: #{tpu_custom_call.1} parent=1 // pred_region
      %s13 = ssub.s32 16, 16
      %14 = vsyncadd [#allocation5], %s13
      %17 = dma.hbm_to_smem %s0, 16, [#allocation2], [#allocation5]
    $region5: #{tpu_custom_call.1} parent=1 // pred_fallthru
      _
    // Predicated region
    $region6: #{tpu_custom_call.1} parent=1 // pred_check
      _
    $region7: #{tpu_custom_call.1} parent=1 // pred_check_branch
      %19 = sbr.rel (0) target = $region9
    $region8: #{tpu_custom_call.1} parent=1 // pred_region
      %s21 = ssub.s32 128, 128
      %22 = vsyncadd [#allocation3], %s21
      %s24 = sshll.u32 [#allocation6], 4
      %s25 = int_to_ptr.vmem [resolvable:$true] %s24
      %27 = dma.hbm_to_vmem [thread:$0]  %s1, 128, %s25, [#allocation3]
    $region9: #{tpu_custom_call.1} parent=1 // pred_fallthru
      _
    // Predicated region
    $region10: #{tpu_custom_call.1} parent=1 // pred_check
      _
    $region11: #{tpu_custom_call.1} parent=1 // pred_check_branch
      %29 = sbr.rel (0) target = $region13
    $region12: #{tpu_custom_call.1} parent=1 // pred_region
      %30 = dma.done [#allocation5], 16
    $region13: #{tpu_custom_call.1} parent=1 // pred_fallthru
      _
    // Predicated region
    $region14: #{tpu_custom_call.1} parent=1 // pred_check
      _
    $region15: #{tpu_custom_call.1} parent=1 // pred_check_branch
      %32 = sbr.rel (0) target = $region17
    $region16: #{tpu_custom_call.1} parent=1 // pred_region
      %33 = dma.done [#allocation3], 128
    $region17: #{tpu_custom_call.1} parent=1 // pred_fallthru
      _
    %34 = sfence
    %s35 = sld [smem:[#allocation2]]
    %s36 = sld [smem:[#allocation2 + $0x1]]
    %s37 = sld [smem:[#allocation2 + $0x2]]
    %s38 = sld [smem:[#allocation2 + $0x3]]
    %s39 = sld [smem:[#allocation2 + $0x4]]
    %s40 = sld [smem:[#allocation2 + $0x5]]
    %v41 = vld [vmem:[#allocation6] sm:$0x1]
    %v42 = vld [vmem:[#allocation6 + $0x1] sm:$0x1]
    %v43 = vld [vmem:[#allocation6 + $0x3] sm:$0x1]
    %v44 = vstv %s35
    %v45 = vmul.f32 %v44, %v41
    %v46 = vmul.f32 %v45, %v43
    %v47 = vstv %s39
    %v48 = vmul.f32 %v47, %v41
    %v49 = vsub.f32 %v46, %v48
    %v50 = vstv %s37
    %v51 = vmul.f32 %v50, %v41
    %v52 = vstv %s40
    %v53 = vmul.f32 %v52, %v42
    %v54 = vsub.f32 %v51, %v53
    %v55 = vstv %s38
    %v56 = vmul.f32 %v55, %v42
    %v57 = vsub.f32 0.0, %v46
    %v58 = vstv %s36
    %v59 = vmul.f32 %v58, %v41
    %v61 = vrot.slane %v54, 7
    %v64 = vrot.slane %v56, 6
    %v67 = vrot.slane %v57, 5
    %v70 = vrot.slane %v59, 4
    %vm72 = vcmask 1040384
    %v73 = vsel %vm72, %v49, %v61
    %vm74 = vcmask 1041408
    %v75 = vsel %vm74, %v73, %v64
    %vm76 = vcmask 1042432
    %v77 = vsel %vm76, %v75, %v67
    %vm78 = vcmask 1043456
    %v79 = vsel %vm78, %v77, %v70
    %vm80 = vcmask 61440
    %81 = vst.msk [vmem:[#allocation7] sm:$0x1f] %vm80, %v79
    // Predicated region
    $region18: #{tpu_custom_call.1} parent=1 // pred_check
      _
    $region19: #{tpu_custom_call.1} parent=1 // pred_check_branch
      %83 = sbr.rel (0) target = $region21
    $region20: #{tpu_custom_call.1} parent=1 // pred_region
      %s85 = ssub.s32 128, 128
      %86 = vsyncadd [#allocation4], %s85
      %s88 = sshll.u32 [#allocation7], 4
      %s89 = int_to_ptr.vmem [resolvable:$true] %s88
      %91 = dma.vmem_to_hbm [thread:$0]  %s89, 128, %s2, [#allocation4]
    $region21: #{tpu_custom_call.1} parent=1 // pred_fallthru
      _
    // Predicated region
    $region22: #{tpu_custom_call.1} parent=1 // pred_check
      _
    $region23: #{tpu_custom_call.1} parent=1 // pred_check_branch
      %93 = sbr.rel (0) target = $region25
    $region24: #{tpu_custom_call.1} parent=1 // pred_region
      %94 = dma.done [#allocation4], 128
    $region25: #{tpu_custom_call.1} parent=1 // pred_fallthru
      _
    %95 = vsyncpa [#allocation3], 1
    %96 = vsyncpa [#allocation4], 1
    %97 = vsyncpa [#allocation5], 1

</llo_original>
